<compile_context>
chip_gen: v7x
topology: tpu7x:2x2x1
jax: 0.10.0
libtpu: 0.0.40
codegen_flags: <defaults>
</compile_context>

<pallas_src>
import functools

import jax
import jax.numpy as jnp
import numpy as np
from jax.experimental import pallas as pl
from jax.experimental.pallas import tpu as pltpu

LEAKY_SLOPE = 0.2
BN_EPS = 1e-5


def _round_up(x, m):
    return (x + m - 1) // m * m


def _conv_stats_kernel(x_ref, w_ref, b_ref, y_ref, stats_ref, *, tm, m_actual):
    """Pass 1: conv matmul (+bias) for one M tile; accumulate global sum/sumsq."""
    i = pl.program_id(0)

    # MXU matmul: bf16 x bf16 -> f32 accumulate.
    y = jnp.dot(x_ref[...], w_ref[...], preferred_element_type=jnp.float32)
    y = y + b_ref[...]
    y_ref[...] = y

    # Mask zero-padded rows of the M dimension so they don't bias BN stats.
    row = i * tm + jax.lax.broadcasted_iota(jnp.int32, (tm, 1), 0)
    ym = jnp.where(row < m_actual, y, 0.0)

    s = jnp.sum(ym, axis=0, keepdims=True)           # (1, Cout_pad)
    ss = jnp.sum(ym * ym, axis=0, keepdims=True)     # (1, Cout_pad)
    upd = jnp.concatenate(
        [s, ss, jnp.zeros((6, s.shape[1]), jnp.float32)], axis=0)  # (8, Cout_pad)

    # stats output block is resident across the whole grid (accumulator).
    @pl.when(i == 0)
    def _():
        stats_ref[...] = jnp.zeros_like(stats_ref)

    stats_ref[...] += upd


def _bn_act_kernel(y_ref, stats_ref, g_ref, be_ref, o_ref, *, inv_m):
    """Pass 2: BN (folded scale/shift) + LeakyReLU on one M tile."""
    mean = stats_ref[0:1, :] * inv_m
    var = jnp.maximum(stats_ref[1:2, :] * inv_m - mean * mean, 0.0)  # biased var
    scale = g_ref[...] * jax.lax.rsqrt(var + BN_EPS)
    shift = be_ref[...] - mean * scale
    z = y_ref[...] * scale + shift
    o_ref[...] = jnp.where(z > 0, z, LEAKY_SLOPE * z)


def downsample_block(x_nchw, weight, bias, gamma, beta, *,
                     kernel_size=3, stride=2, block_m=512,
                     mxu_dtype=jnp.bfloat16):
    """NCHW in / NCHW out, matching conv(stride=2, zero pad) + BN + LeakyReLU."""
    N, Cin, H, W = x_nchw.shape
    Cout = weight.shape[0]
    K = kernel_size
    pad = (K - 1) // 2
    OH = (H + 2 * pad - K) // stride + 1
    OW = (W + 2 * pad - K) // stride + 1

    # ---------------- glue: NCHW -> NHWC, zero pad, im2col ----------------
    x = jnp.transpose(x_nchw, (0, 2, 3, 1))                       # NHWC
    xp = jnp.pad(x, ((0, 0), (pad, pad), (pad, pad), (0, 0)))
    cols = []
    for kh in range(K):
        for kw in range(K):
            cols.append(xp[:, kh:kh + stride * OH:stride,
                           kw:kw + stride * OW:stride, :])
    patches = jnp.stack(cols, axis=3)                             # (N,OH,OW,K*K,Cin)

    M = N * OH * OW
    Kdim = K * K * Cin
    x_mat = patches.reshape(M, Kdim)

    # Lane-dense channels: pad Cout to a multiple of 128.
    cout_pad = _round_up(Cout, 128)
    # M tiles: multiple of 16 (bf16 sublane packing), >= 16.
    tm = max(16, min(_round_up(block_m, 16), _round_up(M, 16)))
    m_pad = _round_up(M, tm)
    n_tiles = m_pad // tm

    x_mat = jnp.pad(x_mat, ((0, m_pad - M), (0, 0))).astype(mxu_dtype)

    # PyTorch conv weight (Cout, Cin, KH, KW) -> (Kdim, Cout_pad).
    # NOTE: for real model sizes (Cin multiple of 128) Kdim is already
    # 128-aligned; at toy sizes it simply stays the full (un-tiled) dim.
    w_mat = jnp.transpose(weight, (2, 3, 1, 0)).reshape(Kdim, Cout)
    w_mat = jnp.pad(w_mat, ((0, 0), (0, cout_pad - Cout))).astype(mxu_dtype)

    def _row(v):
        return jnp.pad(v.astype(jnp.float32).reshape(1, Cout),
                       ((0, 0), (0, cout_pad - Cout)))

    b_row, g_row, be_row = _row(bias), _row(gamma), _row(beta)

    # Explicit scoped-VMEM budget from the chosen tiles (+ headroom),
    # clamped to be safe on every generation (v7x has 64 MiB physical).
    in_item = jnp.dtype(mxu_dtype).itemsize
    vmem_est = (2 * tm * Kdim * in_item           # double-buffered x tile
                + 2 * Kdim * cout_pad * in_item   # weights
                + 4 * tm * cout_pad * 4           # y tiles (out / in+out)
                + 4 * 8 * cout_pad * 4            # stats / bias / gamma / beta
                + (1 << 20))
    vmem_limit = int(min(64 * 1024 * 1024, max(16 * 1024 * 1024, 2 * vmem_est)))

    # ------------- pass 1: conv matmul + sum / sumsq accumulation ----------
    y_mat, stats = pl.pallas_call(
        functools.partial(_conv_stats_kernel, tm=tm, m_actual=M),
        out_shape=(
            jax.ShapeDtypeStruct((m_pad, cout_pad), jnp.float32),
            jax.ShapeDtypeStruct((8, cout_pad), jnp.float32),
        ),
        grid=(n_tiles,),
        in_specs=[
            pl.BlockSpec((tm, Kdim), lambda i: (i, 0)),          # x tile (bf16)
            pl.BlockSpec((Kdim, cout_pad), lambda i: (0, 0)),    # weights
            pl.BlockSpec((1, cout_pad), lambda i: (0, 0)),       # bias
        ],
        out_specs=(
            pl.BlockSpec((tm, cout_pad), lambda i: (i, 0)),      # raw conv y
            pl.BlockSpec((8, cout_pad), lambda i: (0, 0)),       # resident stats
        ),
        compiler_params=pltpu.CompilerParams(
            dimension_semantics=("arbitrary",),
            vmem_limit_bytes=vmem_limit),
    )(x_mat, w_mat, b_row)

    # ------------- pass 2: BN normalize + LeakyReLU -------------------------
    out_mat = pl.pallas_call(
        functools.partial(_bn_act_kernel, inv_m=1.0 / M),
        out_shape=jax.ShapeDtypeStruct((m_pad, cout_pad), jnp.float32),
        grid=(n_tiles,),
        in_specs=[
            pl.BlockSpec((tm, cout_pad), lambda i: (i, 0)),      # y tile
            pl.BlockSpec((8, cout_pad), lambda i: (0, 0)),       # stats
            pl.BlockSpec((1, cout_pad), lambda i: (0, 0)),       # gamma
            pl.BlockSpec((1, cout_pad), lambda i: (0, 0)),       # beta
        ],
        out_specs=pl.BlockSpec((tm, cout_pad), lambda i: (i, 0)),
        compiler_params=pltpu.CompilerParams(
            dimension_semantics=("parallel",),
            vmem_limit_bytes=vmem_limit),
    )(y_mat, stats, g_row, be_row)

    out = out_mat[:M, :Cout].reshape(N, OH, OW, Cout)
    return jnp.transpose(out, (0, 3, 1, 2))                      # back to NCHW


if __name__ == "__main__":
    # Small shapes: batch=2, in_channel=4, out_channel=8, spatial=16, kernel=3.
    N, Cin, Cout, H, W, K = 2, 4, 8, 16, 16, 3
    PAD = (K - 1) // 2

    key = jax.random.PRNGKey(0)
    kx, kw, kb, kg, kbe = jax.random.split(key, 5)

    x = jax.random.normal(kx, (N, Cin, H, W), dtype=jnp.float32)
    weight = jax.random.normal(kw, (Cout, Cin, K, K), dtype=jnp.float32) * 0.1
    bias = jax.random.normal(kb, (Cout,), dtype=jnp.float32) * 0.1
    gamma = 1.0 + 0.1 * jax.random.normal(kg, (Cout,), dtype=jnp.float32)
    beta = 0.1 * jax.random.normal(kbe, (Cout,), dtype=jnp.float32)

    # block_m=64 so the toy problem runs >1 grid step (exercises the
    # resident sum/sumsq accumulator path).
    out = downsample_block(x, weight, bias, gamma, beta,
                           kernel_size=K, stride=2, block_m=64)
    jax.block_until_ready(out)

    expected_shape = (N, Cout, H // 2, W // 2)
    assert out.shape == expected_shape, (out.shape, expected_shape)
    assert bool(jnp.all(jnp.isfinite(out)))

    # Pure-JAX reference (same bf16-rounded matmul inputs as the kernel).
    def reference(x, weight, bias, gamma, beta):
        xb = x.astype(jnp.bfloat16).astype(jnp.float32)
        wb = weight.astype(jnp.bfloat16).astype(jnp.float32)
        y = jax.lax.conv_general_dilated(
            xb, wb, window_strides=(2, 2),
            padding=((PAD, PAD), (PAD, PAD)),
            dimension_numbers=("NCHW", "OIHW", "NCHW"))
        y = y + bias.reshape(1, Cout, 1, 1)
        mean = jnp.mean(y, axis=(0, 2, 3), keepdims=True)
        var = jnp.mean((y - mean) ** 2, axis=(0, 2, 3), keepdims=True)
        z = (gamma.reshape(1, Cout, 1, 1) * (y - mean)
             * jax.lax.rsqrt(var + BN_EPS) + beta.reshape(1, Cout, 1, 1))
        return jnp.where(z > 0, z, LEAKY_SLOPE * z)

    ref = jax.block_until_ready(reference(x, weight, bias, gamma, beta))
    np.testing.assert_allclose(np.asarray(out), np.asarray(ref),
                               atol=5e-3, rtol=5e-3)
    print("KERNEL_OK")
</pallas_src>

<mosaic_0001>
module attributes {stable_mosaic.version = 11 : i64} {
  func.func @_conv_stats_kernel(%arg0: i32, %arg1: memref<64x36xbf16, #tpu.memory_space<vmem>>, %arg2: memref<36x128xbf16, #tpu.memory_space<vmem>>, %arg3: memref<1x128xf32, #tpu.memory_space<vmem>>, %arg4: memref<64x128xf32, #tpu.memory_space<vmem>>, %arg5: memref<8x128xf32, #tpu.memory_space<vmem>>) attributes {dimension_semantics = [#tpu.dimension_semantics<arbitrary>], iteration_bounds = array<i64: 2>, scalar_prefetch = 0 : i64, scratch_operands = 0 : i64, tpu.core_type = #tpu.core_type<tc>, window_params = [{transform_indices = @transform_0, window_bounds = array<i64: 64, 36>}, {pipeline_mode = #tpu.pipeline_mode<synchronous>, transform_indices = @transform_1, window_bounds = array<i64: 36, 128>}, {pipeline_mode = #tpu.pipeline_mode<synchronous>, transform_indices = @transform_2, window_bounds = array<i64: 1, 128>}, {transform_indices = @transform_3, window_bounds = array<i64: 64, 128>}, {pipeline_mode = #tpu.pipeline_mode<synchronous>, transform_indices = @transform_4, window_bounds = array<i64: 8, 128>}]} {
    %c0 = arith.constant 0 : index
    %c0_0 = arith.constant 0 : index
    %0 = vector.load %arg1[%c0, %c0_0] : memref<64x36xbf16, #tpu.memory_space<vmem>>, vector<64x36xbf16>
    %c0_1 = arith.constant 0 : index
    %c0_2 = arith.constant 0 : index
    %1 = vector.load %arg2[%c0_1, %c0_2] : memref<36x128xbf16, #tpu.memory_space<vmem>>, vector<36x128xbf16>
    %cst = arith.constant dense<0.000000e+00> : vector<64x128xf32>
    %2 = tpu.matmul %0, %1, %cst {dimension_numbers = #tpu.dot_dimension_numbers<[1], [0], [0], [1], [0, 0, 1, 1], [], []>} : vector<64x36xbf16>, vector<36x128xbf16>, vector<64x128xf32> -> vector<64x128xf32>
    %c0_3 = arith.constant 0 : index
    %c0_4 = arith.constant 0 : index
    %3 = vector.load %arg3[%c0_3, %c0_4] : memref<1x128xf32, #tpu.memory_space<vmem>>, vector<1x128xf32>
    %4 = vector.broadcast %3 : vector<1x128xf32> to vector<64x128xf32>
    %5 = arith.addf %2, %4 : vector<64x128xf32>
    %c0_5 = arith.constant 0 : index
    %c0_6 = arith.constant 0 : index
    %6 = vector.load %arg4[%c0_5, %c0_6] : memref<64x128xf32, #tpu.memory_space<vmem>>, vector<64x128xf32>
    tpu.vector_store %arg4[%c0_5, %c0_6], %5 {strides = array<i32>} : memref<64x128xf32, #tpu.memory_space<vmem>>, vector<64x128xf32>,
    %c64_i32 = arith.constant 64 : i32
    %7 = arith.muli %arg0, %c64_i32 : i32
    %8 = tpu.iota {dimensions = array<i32: 0>} : vector<64x1xi32>
    %9 = vector.broadcast %7 : i32 to vector<64x1xi32>
    %10 = arith.addi %9, %8 : vector<64x1xi32>
    %c128_i32 = arith.constant 128 : i32
    %11 = vector.broadcast %c128_i32 : i32 to vector<64x1xi32>
    %12 = arith.cmpi slt, %10, %11 : vector<64x1xi32>
    %cst_7 = arith.constant 0.000000e+00 : f32
    %13 = vector.shape_cast %12 : vector<64x1xi1> to vector<64x1xi1>
    %14 = vector.broadcast %13 : vector<64x1xi1> to vector<64x128xi1>
    %15 = vector.broadcast %cst_7 : f32 to vector<64x128xf32>
    %16 = arith.select %14, %5, %15 : vector<64x128xi1>, vector<64x128xf32>
    %cst_8 = arith.constant dense<0.000000e+00> : vector<128xf32>
    %17 = vector.multi_reduction <add>, %16, %cst_8 [0] : vector<64x128xf32> to vector<128xf32>
    %18 = vector.shape_cast %17 : vector<128xf32> to vector<1x128xf32>
    %19 = arith.mulf %16, %16 : vector<64x128xf32>
    %cst_9 = arith.constant dense<0.000000e+00> : vector<128xf32>
    %20 = vector.multi_reduction <add>, %19, %cst_9 [0] : vector<64x128xf32> to vector<128xf32>
    %21 = vector.shape_cast %20 : vector<128xf32> to vector<1x128xf32>
    %cst_10 = arith.constant 0.000000e+00 : f32
    %22 = vector.broadcast %cst_10 : f32 to vector<6x128xf32>
    %23 = tpu.concatenate %18, %21, %22 in 0 : vector<1x128xf32>, vector<1x128xf32>, vector<6x128xf32> -> vector<8x128xf32>
    %c0_i32 = arith.constant 0 : i32
    %24 = arith.cmpi eq, %arg0, %c0_i32 : i32
    %25 = arith.extui %24 : i1 to i32
    %c0_i32_11 = arith.constant 0 : i32
    %26 = arith.cmpi ne, %25, %c0_i32_11 : i32
    scf.if %26 {
      %cst_16 = arith.constant 0.000000e+00 : f32
      %30 = vector.broadcast %cst_16 : f32 to vector<8x128xf32>
      %c0_17 = arith.constant 0 : index
      %c0_18 = arith.constant 0 : index
      %31 = vector.load %arg5[%c0_17, %c0_18] : memref<8x128xf32, #tpu.memory_space<vmem>>, vector<8x128xf32>
      tpu.vector_store %arg5[%c0_17, %c0_18], %30 {strides = array<i32>} : memref<8x128xf32, #tpu.memory_space<vmem>>, vector<8x128xf32>,
    } else {
    }
    %c0_12 = arith.constant 0 : index
    %c0_13 = arith.constant 0 : index
    %27 = vector.load %arg5[%c0_12, %c0_13] : memref<8x128xf32, #tpu.memory_space<vmem>>, vector<8x128xf32>
    %28 = arith.addf %27, %23 : vector<8x128xf32>
    %c0_14 = arith.constant 0 : index
    %c0_15 = arith.constant 0 : index
    %29 = vector.load %arg5[%c0_14, %c0_15] : memref<8x128xf32, #tpu.memory_space<vmem>>, vector<8x128xf32>
    tpu.vector_store %arg5[%c0_14, %c0_15], %28 {strides = array<i32>} : memref<8x128xf32, #tpu.memory_space<vmem>>, vector<8x128xf32>,
    return
  }
  func.func @transform_0(%arg0: i32) -> (i32, i32) {
    %c0_i32 = arith.constant 0 : i32
    %c0_i32_0 = arith.constant 0 : i32
    return %arg0, %c0_i32 : i32, i32
  }
  func.func @transform_1(%arg0: i32) -> (i32, i32) {
    %c0_i32 = arith.constant 0 : i32
    %c0_i32_0 = arith.constant 0 : i32
    %c0_i32_1 = arith.constant 0 : i32
    return %c0_i32, %c0_i32_0 : i32, i32
  }
  func.func @transform_2(%arg0: i32) -> (i32, i32) {
    %c0_i32 = arith.constant 0 : i32
    %c0_i32_0 = arith.constant 0 : i32
    %c0_i32_1 = arith.constant 0 : i32
    return %c0_i32, %c0_i32_0 : i32, i32
  }
  func.func @transform_3(%arg0: i32) -> (i32, i32) {
    %c0_i32 = arith.constant 0 : i32
    %c0_i32_0 = arith.constant 0 : i32
    return %arg0, %c0_i32 : i32, i32
  }
  func.func @transform_4(%arg0: i32) -> (i32, i32) {
    %c0_i32 = arith.constant 0 : i32
    %c0_i32_0 = arith.constant 0 : i32
    %c0_i32_1 = arith.constant 0 : i32
    return %c0_i32, %c0_i32_0 : i32, i32
  }
}

</mosaic_0001>

<llo_original>
// kernel: tpu_custom_call.1
$region0: #{tpu_custom_call.1}
  #allocation0 [shape = 'u32[]', space=smem, size = 0x4, offset = 0x4, fixed_abs, tag = 'smem constant byte address 0x4 - core index']
  #allocation1 [shape = 'u32[144,128]{1,0:T(1,128)}', space=vmem, size = 0x12000, scoped, tag = 'internal scratch']
  %s0 = inlined_call_operand.vmem [shape: bf16[128,36], index: 0, kind: input, shape index: {}]
  %s1 = inlined_call_operand.vmem [shape: bf16[36,128], index: 1, kind: input, shape index: {}]
  %s2 = inlined_call_operand.vmem [shape: f32[1,128], index: 2, kind: input, shape index: {}]
  %s3 = inlined_call_operand.hbm [shape: f32[128,128], index: 3, kind: output, shape index: {0}]
  %s4 = inlined_call_operand.hbm [shape: f32[8,128], index: 4, kind: output, shape index: {1}]
  %5 = xla_tuple %s3, %s4
  %s6 = sld [smem:[#allocation0]]
  $region57: #{tpu_custom_call.1} parent=0
    _
  %s8 = ssub.s32 1, %s6
  %s9 = scalar_select 0, %s8, %s6
  $region1: #{tpu_custom_call.1} parent=0
    #allocation2 [shape = 'u8[65536]{0}', space=vmem, size = 0x10000, scoped, tag = 'output window, operand 0']
    #allocation3 [shape = 's32[2]{0}', space=sflag, size = 0x8, scoped, tag = 'scoped memory for tpu_custom_call.1']
    #allocation4 [shape = 'u8[4096]{0}', space=vmem, size = 0x1000, scoped, tag = 'output window, operand 1, single buffered']
    #allocation5 [shape = 's32[1]{0}', space=sflag, size = 0x4, scoped, tag = 'scoped memory for tpu_custom_call.1']
    %10 = vsyncpa [#allocation3], 0
    %s11 = scalar_lea.sflag [#allocation3], 1
    %12 = vsyncpa %s11, 0
    %13 = vsyncpa [#allocation5], 0
    loop: start=0, step=1, limit=4
    $region2: #{tpu_custom_call.1} parent=1 // loop_pre_header
      _
    $region3: #{tpu_custom_call.1} parent=1 // loop_header
      %s15 = sphi 0, %s19
      %p16 = scmp.ge.s32.totalorder %s15, 4
      %s25 = sphi 0, %s27
      %s28 = sphi 0, %s25
      %s29 = sphi 0, %s28
      %s45 = sphi 0, %s29
      %s49 = sphi 0, %s49
      %s51 = sphi 0, %s49
      %s52 = sphi 0, %s51
      %s66 = sphi 0, %s52
      %s70 = sphi 0, %s70
      %s72 = sphi 0, %s70
      %s73 = sphi 0, %s72
      %s87 = sphi 0, %s73
      %s93 = sphi 0, %s95
      %s96 = sphi 0, %s93
      %s97 = sphi 0, %s96
      %s113 = sphi 0, %s97
      %s117 = sphi 0, %s117
      %s119 = sphi 0, %s117
      %s120 = sphi 0, %s119
      %s134 = sphi 0, %s120
    $region4: #{tpu_custom_call.1} parent=1 // loop_header_branch
      %18 = sbr.rel (%p16) target = $region8
    $region5: #{tpu_custom_call.1} parent=1 // loop_body
      %s20 = ssub.s32 %s15, 1
      %s21 = ssub.s32 %s15, 2
      %s22 = sadd.s32 %s15, 1
      %s23 = ssub.s32 %s15, %s22
      %p24 = scmp.eq.s32.totalorder %s23, 0
      %s26 = sadd.s32 %s25, 1
      %s27 = scalar_select %p24, %s25, %s26
      %p30 = pneg %p24
      %p31 = scmp.eq.s32.totalorder %s15, 1
      %p32 = por %p30, %p31
      %p33 = scmp.ne.s32.totalorder %s25, %s28
      %p34 = scmp.eq.s32.totalorder %s15, 0
      %p35 = por %p33, %p34
      %p36 = scmp.ne.s32.totalorder %s25, %s28
      %p37 = scmp.eq.s32.totalorder %s20, 1
      %p38 = por %p36, %p37
      %p39 = scmp.ne.s32.totalorder %s28, %s29
      %p40 = scmp.eq.s32.totalorder %s20, 0
      %p41 = por %p39, %p40
      %p42 = scmp.ne.s32.totalorder %s28, %s29
      %p43 = scmp.eq.s32.totalorder %s21, 1
      %p44 = por %p42, %p43
      %p46 = scmp.ne.s32.totalorder %s29, %s45
      %p47 = scmp.eq.s32.totalorder %s21, 0
      %p48 = por %p46, %p47
      %s50 = sadd.s32 %s49, 1
      %p53 = scmp.eq.s32.totalorder %s15, 1
      %p54 = scmp.ne.s32.totalorder %s49, %s51
      %p55 = scmp.eq.s32.totalorder %s15, 0
      %p56 = por %p54, %p55
      %p57 = scmp.ne.s32.totalorder %s49, %s51
      %p58 = scmp.eq.s32.totalorder %s20, 1
      %p59 = por %p57, %p58
      %p60 = scmp.ne.s32.totalorder %s51, %s52
      %p61 = scmp.eq.s32.totalorder %s20, 0
      %p62 = por %p60, %p61
      %p63 = scmp.ne.s32.totalorder %s51, %s52
      %p64 = scmp.eq.s32.totalorder %s21, 1
      %p65 = por %p63, %p64
      %p67 = scmp.ne.s32.totalorder %s52, %s66
      %p68 = scmp.eq.s32.totalorder %s21, 0
      %p69 = por %p67, %p68
      %s71 = sadd.s32 %s70, 1
      %p74 = scmp.eq.s32.totalorder %s15, 1
      %p75 = scmp.ne.s32.totalorder %s70, %s72
      %p76 = scmp.eq.s32.totalorder %s15, 0
      %p77 = por %p75, %p76
      %p78 = scmp.ne.s32.totalorder %s70, %s72
      %p79 = scmp.eq.s32.totalorder %s20, 1
      %p80 = por %p78, %p79
      %p81 = scmp.ne.s32.totalorder %s72, %s73
      %p82 = scmp.eq.s32.totalorder %s20, 0
      %p83 = por %p81, %p82
      %p84 = scmp.ne.s32.totalorder %s72, %s73
      %p85 = scmp.eq.s32.totalorder %s21, 1
      %p86 = por %p84, %p85
      %p88 = scmp.ne.s32.totalorder %s73, %s87
      %p89 = scmp.eq.s32.totalorder %s21, 0
      %p90 = por %p88, %p89
      %s91 = ssub.s32 %s15, %s22
      %p92 = scmp.eq.s32.totalorder %s91, 0
      %s94 = sadd.s32 %s93, 1
      %s95 = scalar_select %p92, %s93, %s94
      %p98 = pneg %p92
      %p99 = scmp.eq.s32.totalorder %s15, 1
      %p100 = por %p98, %p99
      %p101 = scmp.ne.s32.totalorder %s93, %s96
      %p102 = scmp.eq.s32.totalorder %s15, 0
      %p103 = por %p101, %p102
      %p104 = scmp.ne.s32.totalorder %s93, %s96
      %p105 = scmp.eq.s32.totalorder %s20, 1
      %p106 = por %p104, %p105
      %p107 = scmp.ne.s32.totalorder %s96, %s97
      %p108 = scmp.eq.s32.totalorder %s20, 0
      %p109 = por %p107, %p108
      %p110 = scmp.ne.s32.totalorder %s96, %s97
      %p111 = scmp.eq.s32.totalorder %s21, 1
      %p112 = por %p110, %p111
      %p114 = scmp.ne.s32.totalorder %s97, %s113
      %p115 = scmp.eq.s32.totalorder %s21, 0
      %p116 = por %p114, %p115
      %s118 = sadd.s32 %s117, 1
      %p121 = scmp.eq.s32.totalorder %s15, 1
      %p122 = scmp.ne.s32.totalorder %s117, %s119
      %p123 = scmp.eq.s32.totalorder %s15, 0
      %p124 = por %p122, %p123
      %p125 = scmp.ne.s32.totalorder %s117, %s119
      %p126 = scmp.eq.s32.totalorder %s20, 1
      %p127 = por %p125, %p126
      %p128 = scmp.ne.s32.totalorder %s119, %s120
      %p129 = scmp.eq.s32.totalorder %s20, 0
      %p130 = por %p128, %p129
      %p131 = scmp.ne.s32.totalorder %s119, %s120
      %p132 = scmp.eq.s32.totalorder %s21, 1
      %p133 = por %p131, %p132
      %p135 = scmp.ne.s32.totalorder %s120, %s134
      %p136 = scmp.eq.s32.totalorder %s21, 0
      %p137 = por %p135, %p136
      %p138 = scmp.le.s32.totalorder 1, %s15
      %p139 = scmp.lt.s32.totalorder %s15, 3
      %p140 = pnand %p138, %p139
      %p141 = pneg %p140
      // Predicated region
      $region9: #{tpu_custom_call.1} parent=5 // pred_check
        _
      $region10: #{tpu_custom_call.1} parent=5 // pred_check_branch
        %143 = sbr.rel (%p140) target = $region12
      $region11: #{tpu_custom_call.1} parent=5 // pred_region
        %s144 = ssub.s32 %s15, 1
        // Predicated region
        $region13: #{tpu_custom_call.1} parent=11 // pred_check
          %p145 = pneg %p62
        $region14: #{tpu_custom_call.1} parent=11 // pred_check_branch
          %147 = sbr.rel (%p145) target = $region16
        $region15: #{tpu_custom_call.1} parent=11 // pred_region
          _
        $region16: #{tpu_custom_call.1} parent=11 // pred_fallthru
          _
        // Predicated region
        $region17: #{tpu_custom_call.1} parent=11 // pred_check
          %p148 = pneg %p83
        $region18: #{tpu_custom_call.1} parent=11 // pred_check_branch
          %150 = sbr.rel (%p148) target = $region20
        $region19: #{tpu_custom_call.1} parent=11 // pred_region
          _
        $region20: #{tpu_custom_call.1} parent=11 // pred_fallthru
          _
      $region12: #{tpu_custom_call.1} parent=5 // pred_fallthru
        _
      %p151 = scmp.lt.s32.totalorder %s15, 2
      // Predicated region
      $region21: #{tpu_custom_call.1} parent=5 // pred_check
        %p152 = pneg %p151
      $region22: #{tpu_custom_call.1} parent=5 // pred_check_branch
        %154 = sbr.rel (%p152) target = $region24
      $region23: #{tpu_custom_call.1} parent=5 // pred_region
        // Predicated region
        $region25: #{tpu_custom_call.1} parent=23 // pred_check
          %p155 = pneg %p35
        $region26: #{tpu_custom_call.1} parent=23 // pred_check_branch
          %157 = sbr.rel (%p155) target = $region28
        $region27: #{tpu_custom_call.1} parent=23 // pred_region
          %s158 = smul.u32 8, %s15
          %p159 = scmp.lt.s32.totalorder %s158, 15
          %s160 = scalar_select %p159, %s158, 15
          %s161 = smul.addr %s160, 4
          %s162 = scalar_lea.vmem %s0, %s161
          %s163 = smul.u32 8, %s15
        $region28: #{tpu_custom_call.1} parent=23 // pred_fallthru
          _
      $region24: #{tpu_custom_call.1} parent=5 // pred_fallthru
        _
      %p164 = scmp.le.s32.totalorder 1, %s15
      %p165 = scmp.lt.s32.totalorder %s15, 3
      %p166 = pnand %p164, %p165
      %p167 = pneg %p166
      // Predicated region
      $region29: #{tpu_custom_call.1} parent=5 // pred_check
        _
      $region30: #{tpu_custom_call.1} parent=5 // pred_check_branch
        %169 = sbr.rel (%p166) target = $region32
      $region31: #{tpu_custom_call.1} parent=5 // pred_region
        %s170 = ssub.s32 %s15, 1
        %s171 = smul.u32 8, %s20
        %p172 = scmp.lt.s32.totalorder %s171, 15
        %s173 = scalar_select %p172, %s171, 15
        %s174 = smul.addr %s173, 4
        %s175 = scalar_lea.vmem %s0, %s174
        %p176 = pneg %p41
        %p177 = pneg %p38
        %p178 = pneg %p62
        %p179 = pneg %p59
        %p180 = pneg %p83
        %p181 = pneg %p80
        %p182 = pneg %p109
        %p183 = pneg %p106
        %s184 = sand.u32 %s96, 1
        %s185 = scalar_lea.sflag [#allocation3], %s184
        %s186 = sand.u32 %s96, 1
        %s187 = smul.addr %s186, 64
        %s188 = scalar_lea.vmem [#allocation2], %s187
        %p189 = pneg %p130
        %p190 = pneg %p127
        %s191 = smul.u32 8, %s20
        %p192 = scmp.lt.s32.totalorder %s191, 15
        %s193 = scalar_select %p192, %s191, 15
        %s194 = smul.addr %s193, 4
        %s195 = scalar_lea.vmem %s0, %s194
        %s196 = smul.u32 8, %s20
        %s197 = smul.u32 8, %s20
        %v199 = vld [vmem:[%s195] sm:$0xf]
        %v200 = vld [vmem:[%s195 + $0x4] sm:$0xf]
        %v201 = vld [vmem:[%s195 + $0x8] sm:$0xf]
        %v202 = vld [vmem:[%s195 + $0xc] sm:$0xf]
        %v203 = vld [vmem:[%s195 + $0x10] sm:$0xf]
        %v204 = vld [vmem:[%s195 + $0x14] sm:$0xf]
        %v205 = vld [vmem:[%s195 + $0x18] sm:$0xf]
        %v206 = vld [vmem:[%s195 + $0x1c] sm:$0xf]
        %v207 = vld [vmem:[%s1] sm:$0xf]
        %v208 = vld [vmem:[%s1 + $0x4] sm:$0xf]
        %v209 = vld [vmem:[%s1 + $0x8] sm:$0xf]
        %v210 = vld [vmem:[%s1 + $0xc] sm:$0xf]
        %v211 = vld [vmem:[%s1 + $0x10] sm:$0x3]
        %v212 = vld [vmem:[%s2] sm:$0x1]
        %v214 = vlaneseq
        %v215 = vshrl.u32 %v214, 7
        %v216 = vsub.s32 0, %v215
        %v217 = vrot.slane %v212, %v216
        %v227 = vunpack.c.l.b16 %v199
        %v228 = vunpack.c.l.b16 %v200
        %v229 = vunpack.c.l.b16 %v201
        %v230 = vunpack.c.l.b16 %v202
        %v231 = vunpack.c.l.b16 %v203
        %v232 = vunpack.c.l.b16 %v204
        %v233 = vunpack.c.l.b16 %v205
        %v234 = vunpack.c.l.b16 %v206
        %v235 = vpack.c.b16 %v228, %v227
        %v236 = vpack.c.b16 %v230, %v229
        %v237 = vpack.c.b16 %v232, %v231
        %v238 = vpack.c.b16 %v234, %v233
        %v244 = vunpack.c.l.b16 %v207
        %v245 = vunpack.c.l.b16 %v208
        %v246 = vunpack.c.l.b16 %v209
        %v247 = vunpack.c.l.b16 %v210
        %v248 = vunpack.c.l.b16 %v211
        %v249 = vpack.c.b16 %v245, %v244
        %v250 = vpack.c.b16 %v247, %v246
        %v251 = vpack.c.b16 %v248, %v248
        %vm254 = vcmask 293888
        %v256 = vsel %vm254, %v235, 0
        %v259 = vsel %vm254, %v236, 0
        %v262 = vsel %vm254, %v237, 0
        %v265 = vsel %vm254, %v238, 0
        %vm267 = vcmask 1041408
        %v269 = vsel %vm267, %v251, 0
        %271 = vmatprep.subr.bf16.mxu0 0
        %272 = vmatpush1.bf16.msra.mxu0 %v249
        %273 = vmatprep.subr.bf16.mxu0 0
        %274 = vmatpush1.bf16.msra.mxu0 %v250
        %275 = vmatprep.subr.bf16.mxu0 0
        %276 = vmatpush1.bf16.msra.mxu0 %v269
        %277 = vmatprep.subr.bf16.mxu0 0
        %278 = vmatpush1.bf16.msra.mxu0 0
        %279 = vmatprep.subr.bf16.mxu0 0
        %280 = vmatpush1.bf16.msra.mxu0 0
        %281 = vmatprep.subr.bf16.mxu0 0
        %282 = vmatpush1.bf16.msra.mxu0 0
        %283 = vmatprep.subr.bf16.mxu0 0
        %284 = vmatpush1.bf16.msra.mxu0 0
        %285 = vmatprep.subr.bf16.mxu0 0
        %286 = vmatpush1.bf16.msra.mxu0 0
        %287 = vmatprep.subr.bf16.mxu0 0
        %288 = vmatpush1.bf16.msra.mxu0 0
        %289 = vmatprep.subr.bf16.mxu0 0
        %290 = vmatpush1.bf16.msra.mxu0 0
        %291 = vmatprep.subr.bf16.mxu0 0
        %292 = vmatpush1.bf16.msra.mxu0 0
        %293 = vmatprep.subr.bf16.mxu0 0
        %294 = vmatpush1.bf16.msra.mxu0 0
        %295 = vmatprep.subr.bf16.mxu0 0
        %296 = vmatpush1.bf16.msra.mxu0 0
        %297 = vmatprep.subr.bf16.mxu0 0
        %298 = vmatpush1.bf16.msra.mxu0 0
        %299 = vmatprep.subr.bf16.mxu0 0
        %300 = vmatpush1.bf16.msra.mxu0 0
        %301 = vmatprep.subr.bf16.mxu0 0
        %302 = vmatpush1.bf16.msra.mxu0 0
        %303 = vmatprep.mubr.bf16.mxu0 0
        %304 = vmatmul.mubr.bf16.gmra.mrb[0].mxu0 %v256
        %v305 = vpop.f32.mrb[0].mxu0
        %v306 = vadd.f32 %v217, %v305
        %v307 = vpop.f32.mrb[0].mxu0
        %v308 = vpop.f32.mrb[0].mxu0
        %v309 = vadd.f32 %v217, %v308
        %v310 = vpop.f32.mrb[0].mxu0
        %311 = vmatprep.mubr.bf16.mxu0 0
        %312 = vmatmul.mubr.bf16.gmra.mrb[0].mxu0 %v259
        %v313 = vpop.f32.mrb[0].mxu0
        %v314 = vadd.f32 %v217, %v313
        %v315 = vpop.f32.mrb[0].mxu0
        %v316 = vpop.f32.mrb[0].mxu0
        %v317 = vadd.f32 %v217, %v316
        %v318 = vpop.f32.mrb[0].mxu0
        %319 = vmatprep.mubr.bf16.mxu0 0
        %320 = vmatmul.mubr.bf16.gmra.mrb[0].mxu0 %v262
        %v321 = vpop.f32.mrb[0].mxu0
        %v322 = vadd.f32 %v217, %v321
        %v323 = vpop.f32.mrb[0].mxu0
        %v324 = vpop.f32.mrb[0].mxu0
        %v325 = vadd.f32 %v217, %v324
        %v326 = vpop.f32.mrb[0].mxu0
        %327 = vmatprep.mubr.bf16.mxu0 0
        %328 = vmatmul.mubr.bf16.gmra.mrb[0].mxu0 %v265
        %v329 = vpop.f32.mrb[0].mxu0
        %v330 = vadd.f32 %v217, %v329
        %v331 = vpop.f32.mrb[0].mxu0
        %v332 = vpop.f32.mrb[0].mxu0
        %v333 = vadd.f32 %v217, %v332
        %v334 = vpop.f32.mrb[0].mxu0
        %335 = vdwg.mxu0
        %336 = vst [vmem:[%s188] sm:$0xff] %v306
        %337 = vst [vmem:[%s188 + $0x8] sm:$0xff] %v309
        %338 = vst [vmem:[%s188 + $0x10] sm:$0xff] %v314
        %339 = vst [vmem:[%s188 + $0x18] sm:$0xff] %v317
        %340 = vst [vmem:[%s188 + $0x20] sm:$0xff] %v322
        %341 = vst [vmem:[%s188 + $0x28] sm:$0xff] %v325
        %342 = vst [vmem:[%s188 + $0x30] sm:$0xff] %v330
        %343 = vst [vmem:[%s188 + $0x38] sm:$0xff] %v333
        %s344 = smul.u32 %s20, 64
        %v345 = vlaneseq
        %v346 = vshrl.u32 %v345, 7
        %v347 = vadd.s32 %v346, 8
        %v348 = vadd.s32 %v346, 16
        %v349 = vadd.s32 %v346, 24
        %v350 = vadd.s32 %v346, 32
        %v351 = vadd.s32 %v346, 40
        %v352 = vadd.s32 %v346, 48
        %v353 = vadd.s32 %v346, 56
        %v354 = vstv %s344
        %v355 = vadd.s32 %v354, %v346
        %v356 = vadd.s32 %v354, %v347
        %v357 = vadd.s32 %v354, %v348
        %v358 = vadd.s32 %v354, %v349
        %v359 = vadd.s32 %v354, %v350
        %v360 = vadd.s32 %v354, %v351
        %v361 = vadd.s32 %v354, %v352
        %v362 = vadd.s32 %v354, %v353
        %vm363 = vcmp.lt.s32.totalorder %v355, 128
        %vm364 = vcmp.lt.s32.totalorder %v356, 128
        %vm365 = vcmp.lt.s32.totalorder %v357, 128
        %vm366 = vcmp.lt.s32.totalorder %v358, 128
        %vm367 = vcmp.lt.s32.totalorder %v359, 128
        %vm368 = vcmp.lt.s32.totalorder %v360, 128
        %vm369 = vcmp.lt.s32.totalorder %v361, 128
        %vm370 = vcmp.lt.s32.totalorder %v362, 128
        %v371 = vsel %vm363, 1, 0
        %v372 = vsel %vm364, 1, 0
        %v373 = vsel %vm365, 1, 0
        %v374 = vsel %vm366, 1, 0
        %v375 = vsel %vm367, 1, 0
        %v376 = vsel %vm368, 1, 0
        %v377 = vsel %vm369, 1, 0
        %v378 = vsel %vm370, 1, 0
        %vm379 = vcmp.eq.s32.totalorder %v371, 1
        %vm380 = vcmp.eq.s32.totalorder %v372, 1
        %vm381 = vcmp.eq.s32.totalorder %v373, 1
        %vm382 = vcmp.eq.s32.totalorder %v374, 1
        %vm383 = vcmp.eq.s32.totalorder %v375, 1
        %vm384 = vcmp.eq.s32.totalorder %v376, 1
        %vm385 = vcmp.eq.s32.totalorder %v377, 1
        %vm386 = vcmp.eq.s32.totalorder %v378, 1
        %v387 = vsel %vm379, %v306, 0.0
        %v388 = vsel %vm380, %v309, 0.0
        %v389 = vsel %vm381, %v314, 0.0
        %v390 = vsel %vm382, %v317, 0.0
        %v391 = vsel %vm383, %v322, 0.0
        %v392 = vsel %vm384, %v325, 0.0
        %v393 = vsel %vm385, %v330, 0.0
        %v394 = vsel %vm386, %v333, 0.0
        %v395 = vadd.f32 %v387, %v388
        %v396 = vadd.f32 %v395, %v389
        %v397 = vadd.f32 %v396, %v390
        %v398 = vadd.f32 %v397, %v391
        %v399 = vadd.f32 %v398, %v392
        %v400 = vadd.f32 %v399, %v393
        %v401 = vadd.f32 %v400, %v394
        %v402 = vrot.slane %v401, 4
        %v403 = vadd.f32 %v401, %v402
        %v404 = vrot.slane %v403, 2
        %v405 = vadd.f32 %v403, %v404
        %v406 = vrot.slane %v405, 1
        %v407 = vadd.f32 %v405, %v406
        %v408 = vmul.f32 %v387, %v387
        %v409 = vmul.f32 %v388, %v388
        %v410 = vmul.f32 %v389, %v389
        %v411 = vmul.f32 %v390, %v390
        %v412 = vmul.f32 %v391, %v391
        %v413 = vmul.f32 %v392, %v392
        %v414 = vmul.f32 %v393, %v393
        %v415 = vmul.f32 %v394, %v394
        %v416 = vadd.f32 %v408, %v409
        %v417 = vadd.f32 %v416, %v410
        %v418 = vadd.f32 %v417, %v411
        %v419 = vadd.f32 %v418, %v412
        %v420 = vadd.f32 %v419, %v413
        %v421 = vadd.f32 %v420, %v414
        %v422 = vadd.f32 %v421, %v415
        %v423 = vrot.slane %v422, 4
        %v424 = vadd.f32 %v422, %v423
        %v425 = vrot.slane %v424, 2
        %v426 = vadd.f32 %v424, %v425
        %v427 = vrot.slane %v426, 1
        %v428 = vadd.f32 %v426, %v427
        %vm429 = vcmask 1040384
        %v430 = vsel %vm429, %v407, %v428
        %v431 = vsel %vm267, %v430, 0.0
        %p432 = scmp.eq.s32.totalorder %s20, 0
        // Predicated region
        $region33: #{tpu_custom_call.1} parent=31 // pred_check
          %p433 = pneg %p432
        $region34: #{tpu_custom_call.1} parent=31 // pred_check_branch
          %435 = sbr.rel (%p433) target = $region36
        $region35: #{tpu_custom_call.1} parent=31 // pred_region
          %436 = vst [vmem:[#allocation4] sm:$0xff] 0.0
        $region36: #{tpu_custom_call.1} parent=31 // pred_fallthru
          _
        %v437 = vld [vmem:[#allocation4] sm:$0xff]
        %v438 = vadd.f32 %v437, %v431
        %439 = vst [vmem:[#allocation4] sm:$0xff] %v438
        %s440 = sand.u32 %s96, 1
        %s441 = scalar_lea.sflag [#allocation3], %s440
        %s442 = sand.u32 %s96, 1
        %s443 = smul.addr %s442, 64
        %s444 = scalar_lea.vmem [#allocation2], %s443
        // Predicated region
        $region37: #{tpu_custom_call.1} parent=31 // pred_check
          %p445 = pneg %p106
        $region38: #{tpu_custom_call.1} parent=31 // pred_check_branch
          %447 = sbr.rel (%p445) target = $region40
        $region39: #{tpu_custom_call.1} parent=31 // pred_region
          %s448 = smul.u32 8, %s20
          %s450 = ssub.s32 1024, 1024
          %451 = vsyncadd %s441, %s450
          %s452 = smul.addr %s448, 128
          %s453 = scalar_lea.hbm %s3, %s452
          %s454 = sshll.u32 %s444, 4
          %s455 = int_to_ptr.vmem [resolvable:$true] %s454
          %460 = dma.vmem_to_hbm [thread:$0]  %s455, 1024, %s453, %s441, 128, 128, 8
        $region40: #{tpu_custom_call.1} parent=31 // pred_fallthru
          _
        // Predicated region
        $region41: #{tpu_custom_call.1} parent=31 // pred_check
          %p461 = pneg %p127
        $region42: #{tpu_custom_call.1} parent=31 // pred_check_branch
          %463 = sbr.rel (%p461) target = $region44
        $region43: #{tpu_custom_call.1} parent=31 // pred_region
          %s465 = ssub.s32 128, 128
          %466 = vsyncadd [#allocation5], %s465
          %s468 = sshll.u32 [#allocation4], 4
          %s469 = int_to_ptr.vmem [resolvable:$true] %s468
          %471 = dma.vmem_to_hbm [thread:$0]  %s469, 128, %s4, [#allocation5]
        $region44: #{tpu_custom_call.1} parent=31 // pred_fallthru
          _
        // Predicated region
        $region45: #{tpu_custom_call.1} parent=31 // pred_check
          %p472 = pneg %p127
        $region46: #{tpu_custom_call.1} parent=31 // pred_check_branch
          %474 = sbr.rel (%p472) target = $region48
        $region47: #{tpu_custom_call.1} parent=31 // pred_region
          %475 = dma.done [#allocation5], 128
        $region48: #{tpu_custom_call.1} parent=31 // pred_fallthru
          _
      $region32: #{tpu_custom_call.1} parent=5 // pred_fallthru
        _
      %p476 = scmp.le.s32.totalorder 2, %s15
      // Predicated region
      $region49: #{tpu_custom_call.1} parent=5 // pred_check
        %p477 = pneg %p476
      $region50: #{tpu_custom_call.1} parent=5 // pred_check_branch
        %479 = sbr.rel (%p477) target = $region52
      $region51: #{tpu_custom_call.1} parent=5 // pred_region
        %s480 = ssub.s32 %s15, 2
        // Predicated region
        $region53: #{tpu_custom_call.1} parent=51 // pred_check
          %p481 = pneg %p112
        $region54: #{tpu_custom_call.1} parent=51 // pred_check_branch
          %483 = sbr.rel (%p481) target = $region56
        $region55: #{tpu_custom_call.1} parent=51 // pred_region
          %s484 = sand.u32 %s97, 1
          %s485 = scalar_lea.sflag [#allocation3], %s484
          %s486 = sand.u32 %s97, 1
          %s487 = smul.addr %s486, 64
          %s488 = scalar_lea.vmem [#allocation2], %s487
          %489 = dma.done %s485, 1024
        $region56: #{tpu_custom_call.1} parent=51 // pred_fallthru
          _
      $region52: #{tpu_custom_call.1} parent=5 // pred_fallthru
        _
    $region6: #{tpu_custom_call.1} parent=1 // loop_footer
      %s19 = sadd.s32 1, %s15
    $region7: #{tpu_custom_call.1} parent=1 // loop_footer_branch
      %14 = sbr.rel target = $region3
    $region8: #{tpu_custom_call.1} parent=1 // loop_exit
      _
    %490 = vsyncpa [#allocation3], 1
    %s491 = scalar_lea.sflag [#allocation3], 1
    %492 = vsyncpa %s491, 1
    %493 = vsyncpa [#allocation5], 1

</llo_original>
